<compile_context>
chip_gen: v6e
topology: v6e:2x2x1
jax: 0.10.0
libtpu: 0.0.40
codegen_flags: <defaults>
</compile_context>

<pallas_src>
import functools

import jax
import jax.numpy as jnp
from jax import lax
from jax.experimental import pallas as pl
from jax.experimental.pallas import tpu as pltpu

_EPS = 1e-12           # torch.nn.functional.normalize default eps
_EPS2 = _EPS * _EPS    # compare against sum-of-squares (rsqrt formulation)


def _round_up(x, m):
    return ((x + m - 1) // m) * m


def _fcnorm_kernel(x_ref, wt_ref, inv_xn_ref, inv_wn_ref, o_ref, acc_ref,
                   *, precision):
    k = pl.program_id(2)

    @pl.when(k == 0)
    def _init():
        acc_ref[...] = jnp.zeros_like(acc_ref)

    # Canonical (tm,tk)x(tk,tn) MXU matmul, f32 accumulation in VMEM scratch.
    acc_ref[...] += jnp.dot(
        x_ref[...], wt_ref[...],
        preferred_element_type=jnp.float32,
        precision=precision)

    @pl.when(k == pl.num_programs(2) - 1)
    def _finalize():
        # Post-scale the small output tile: (tm,1) row scale * (1,tn) col
        # scale.  Both scales were precomputed once in the wrapper; padded
        # rows/cols have s == 0 so 0 * 1e12 == 0 (no NaN) and are sliced off.
        o_ref[...] = (acc_ref[...] * inv_xn_ref[...] * inv_wn_ref[...]
                      ).astype(o_ref.dtype)


def fcnorm(x, weight, *, tm=512, tn=256, tk=512, precision=None):
    """out = normalize(x, dim=-1) @ normalize(weight, dim=-1).T"""
    B, F = x.shape
    C, Fw = weight.shape
    assert F == Fw

    if precision is None:
        # Match PyTorch fp32 F.linear for f32 inputs; default for bf16.
        precision = (lax.Precision.HIGHEST if x.dtype == jnp.float32
                     else lax.Precision.DEFAULT)

    # Clamp tiles to the (padded) problem size; keep output lane-dense
    # (tn multiple of 128), sublane-aligned rows (tm multiple of 8) and a
    # 128-aligned K tile.
    tm = min(tm, _round_up(B, 8))
    tn = min(tn, _round_up(C, 128))
    tk = min(tk, _round_up(F, 128))
    Bp = _round_up(B, tm)
    Cp = _round_up(C, tn)
    Fp = _round_up(F, tk)

    # Zero-pad batch / class / feature dims (zero padding is harmless: it
    # contributes nothing to dots or norms).
    xp = x if (Bp, Fp) == (B, F) else jnp.pad(x, ((0, Bp - B), (0, Fp - F)))
    wp = (weight if (Cp, Fp) == (C, F)
          else jnp.pad(weight, ((0, Cp - C), (0, Fp - F))))
    # Pre-transpose the weight ONCE so the kernel sees a (K, N) operand.
    wtp = wp.T                                               # (Fp, Cp)

    # Precompute BOTH inverse norms once (not per tile) in f32.
    xf = xp.astype(jnp.float32)
    inv_xn = lax.rsqrt(
        jnp.maximum(jnp.sum(xf * xf, axis=-1, keepdims=True), _EPS2))  # (Bp,1)
    wf = wp.astype(jnp.float32)
    inv_wn = lax.rsqrt(
        jnp.maximum(jnp.sum(wf * wf, axis=-1, keepdims=True), _EPS2)
    ).reshape(1, Cp)                                                   # (1,Cp)

    in_itemsize = jnp.dtype(x.dtype).itemsize
    out_itemsize = in_itemsize

    # VMEM budget from the actual tile footprint (double-buffered inputs and
    # output, plus the f32 accumulator); capped so it is safe on v7x (64 MiB).
    footprint = (2 * (tm * tk + tk * tn) * in_itemsize
                 + 2 * tm * tn * out_itemsize
                 + tm * tn * 4
                 + 2 * (tm + tn) * 4)
    vmem_limit = int(min(max(2 * footprint, 32 * 1024 * 1024),
                         48 * 1024 * 1024))

    # Real traffic: x read once, weight re-read Bp/tm times (once for typical
    # batches since tm defaults to 512), output written once, norms tiny.
    cost = pl.CostEstimate(
        flops=2 * Bp * Cp * Fp,
        transcendentals=0,
        bytes_accessed=((Bp * Fp + (Bp // tm) * Fp * Cp) * in_itemsize
                        + Bp * Cp * out_itemsize
                        + (Bp + Cp) * 4))

    kernel = functools.partial(_fcnorm_kernel, precision=precision)

    out_p = pl.pallas_call(
        kernel,
        out_shape=jax.ShapeDtypeStruct((Bp, Cp), x.dtype),
        grid_spec=pltpu.PrefetchScalarGridSpec(
            num_scalar_prefetch=0,
            grid=(Bp // tm, Cp // tn, Fp // tk),
            in_specs=[
                pl.BlockSpec((tm, tk), lambda i, j, k: (i, k)),   # x tile
                pl.BlockSpec((tk, tn), lambda i, j, k: (k, j)),   # w.T tile
                pl.BlockSpec((tm, 1), lambda i, j, k: (i, 0)),    # inv ||x||
                pl.BlockSpec((1, tn), lambda i, j, k: (0, j)),    # inv ||w||
            ],
            out_specs=pl.BlockSpec((tm, tn), lambda i, j, k: (i, j)),
            scratch_shapes=[pltpu.VMEM((tm, tn), jnp.float32)],
        ),
        compiler_params=pltpu.CompilerParams(
            dimension_semantics=("parallel", "parallel", "arbitrary"),
            vmem_limit_bytes=vmem_limit),
        cost_estimate=cost,
    )(xp, wtp, inv_xn, inv_wn)

    return out_p[:B, :C]


def init_fcnorm_weight(key, num_classes, num_features):
    """Replicates: uniform_(-1,1).renorm_(2, 1, 1e-5).mul_(1e5)."""
    w = jax.random.uniform(key, (num_classes, num_features),
                           dtype=jnp.float32, minval=-1.0, maxval=1.0)
    maxnorm = 1e-5
    # renorm along dim=1: each column rescaled so its L2 norm is <= maxnorm
    # (torch adds 1e-7 to the norm when rescaling).
    col_norm = jnp.sqrt(jnp.sum(w * w, axis=0, keepdims=True))  # (1, F)
    scale = jnp.where(col_norm > maxnorm, maxnorm / (col_norm + 1e-7), 1.0)
    w = w * scale
    return w * 1e5


if __name__ == "__main__":
    key = jax.random.PRNGKey(0)
    kx, kw = jax.random.split(key)

    B, num_features, num_classes = 8, 32, 16
    x = jax.random.normal(kx, (B, num_features), dtype=jnp.float32)
    weight = init_fcnorm_weight(kw, num_classes, num_features)

    out = fcnorm(x, weight)
    out = jax.block_until_ready(out)

    # Reference check in plain JAX (pre-normalized formulation).
    xn = x / jnp.maximum(jnp.linalg.norm(x, axis=-1, keepdims=True), _EPS)
    wn = weight / jnp.maximum(
        jnp.linalg.norm(weight, axis=-1, keepdims=True), _EPS)
    ref = xn @ wn.T
    assert out.shape == (B, num_classes)
    assert jnp.allclose(out, ref, atol=1e-5, rtol=1e-5)

    print("KERNEL_OK")
</pallas_src>

<mosaic_0001>
module attributes {stable_mosaic.version = 11 : i64} {
  func.func @_fcnorm_kernel(%arg0: i32, %arg1: i32, %arg2: i32, %arg3: memref<8x128xf32, #tpu.memory_space<vmem>>, %arg4: memref<128x128xf32, #tpu.memory_space<vmem>>, %arg5: memref<8x1xf32, #tpu.memory_space<vmem>>, %arg6: memref<1x128xf32, #tpu.memory_space<vmem>>, %arg7: memref<8x128xf32, #tpu.memory_space<vmem>>, %arg8: memref<8x128xf32, #tpu.memory_space<vmem>>) attributes {dimension_semantics = [#tpu.dimension_semantics<parallel>, #tpu.dimension_semantics<parallel>, #tpu.dimension_semantics<arbitrary>], iteration_bounds = array<i64: 1, 1, 1>, scalar_prefetch = 0 : i64, scratch_operands = 1 : i64, tpu.core_type = #tpu.core_type<tc>, window_params = [{transform_indices = @transform_0, window_bounds = array<i64: 8, 128>}, {transform_indices = @transform_1, window_bounds = array<i64: 128, 128>}, {transform_indices = @transform_2, window_bounds = array<i64: 8, 1>}, {transform_indices = @transform_3, window_bounds = array<i64: 1, 128>}, {transform_indices = @transform_4, window_bounds = array<i64: 8, 128>}]} {
    %c0_i32 = arith.constant 0 : i32
    %0 = arith.cmpi eq, %arg2, %c0_i32 : i32
    %1 = arith.extui %0 : i1 to i32
    %c0_i32_0 = arith.constant 0 : i32
    %2 = arith.cmpi ne, %1, %c0_i32_0 : i32
    scf.if %2 {
      %cst_10 = arith.constant 0.000000e+00 : f32
      %12 = vector.broadcast %cst_10 : f32 to vector<8x128xf32>
      %c0_11 = arith.constant 0 : index
      %c0_12 = arith.constant 0 : index
      %13 = vector.load %arg8[%c0_11, %c0_12] : memref<8x128xf32, #tpu.memory_space<vmem>>, vector<8x128xf32>
      tpu.vector_store %arg8[%c0_11, %c0_12], %12 {strides = array<i32>} : memref<8x128xf32, #tpu.memory_space<vmem>>, vector<8x128xf32>,
    } else {
    }
    %c0 = arith.constant 0 : index
    %c0_1 = arith.constant 0 : index
    %3 = vector.load %arg8[%c0, %c0_1] : memref<8x128xf32, #tpu.memory_space<vmem>>, vector<8x128xf32>
    %c0_2 = arith.constant 0 : index
    %c0_3 = arith.constant 0 : index
    %4 = vector.load %arg3[%c0_2, %c0_3] : memref<8x128xf32, #tpu.memory_space<vmem>>, vector<8x128xf32>
    %c0_4 = arith.constant 0 : index
    %c0_5 = arith.constant 0 : index
    %5 = vector.load %arg4[%c0_4, %c0_5] : memref<128x128xf32, #tpu.memory_space<vmem>>, vector<128x128xf32>
    %cst = arith.constant dense<0.000000e+00> : vector<8x128xf32>
    %6 = tpu.matmul %4, %5, %cst {dimension_numbers = #tpu.dot_dimension_numbers<[1], [0], [0], [1], [0, 0, 1, 1], [], []>, precision = #tpu.contract_precision<fp32>} : vector<8x128xf32>, vector<128x128xf32>, vector<8x128xf32> -> vector<8x128xf32>
    %7 = arith.addf %3, %6 : vector<8x128xf32>
    %c0_6 = arith.constant 0 : index
    %c0_7 = arith.constant 0 : index
    %8 = vector.load %arg8[%c0_6, %c0_7] : memref<8x128xf32, #tpu.memory_space<vmem>>, vector<8x128xf32>
    tpu.vector_store %arg8[%c0_6, %c0_7], %7 {strides = array<i32>} : memref<8x128xf32, #tpu.memory_space<vmem>>, vector<8x128xf32>,
    %c0_i32_8 = arith.constant 0 : i32
    %9 = arith.cmpi eq, %arg2, %c0_i32_8 : i32
    %10 = arith.extui %9 : i1 to i32
    %c0_i32_9 = arith.constant 0 : i32
    %11 = arith.cmpi ne, %10, %c0_i32_9 : i32
    scf.if %11 {
      %c0_10 = arith.constant 0 : index
      %c0_11 = arith.constant 0 : index
      %12 = vector.load %arg8[%c0_10, %c0_11] : memref<8x128xf32, #tpu.memory_space<vmem>>, vector<8x128xf32>
      %c0_12 = arith.constant 0 : index
      %c0_13 = arith.constant 0 : index
      %13 = vector.load %arg5[%c0_12, %c0_13] : memref<8x1xf32, #tpu.memory_space<vmem>>, vector<8x1xf32>
      %14 = vector.broadcast %13 : vector<8x1xf32> to vector<8x128xf32>
      %15 = arith.mulf %12, %14 : vector<8x128xf32>
      %c0_14 = arith.constant 0 : index
      %c0_15 = arith.constant 0 : index
      %16 = vector.load %arg6[%c0_14, %c0_15] : memref<1x128xf32, #tpu.memory_space<vmem>>, vector<1x128xf32>
      %17 = vector.broadcast %16 : vector<1x128xf32> to vector<8x128xf32>
      %18 = arith.mulf %15, %17 : vector<8x128xf32>
      %c0_16 = arith.constant 0 : index
      %c0_17 = arith.constant 0 : index
      %19 = vector.load %arg7[%c0_16, %c0_17] : memref<8x128xf32, #tpu.memory_space<vmem>>, vector<8x128xf32>
      tpu.vector_store %arg7[%c0_16, %c0_17], %18 {strides = array<i32>} : memref<8x128xf32, #tpu.memory_space<vmem>>, vector<8x128xf32>,
    } else {
    }
    return
  }
  func.func @transform_0(%arg0: i32, %arg1: i32, %arg2: i32) -> (i32, i32) {
    %c0_i32 = arith.constant 0 : i32
    return %arg0, %arg2 : i32, i32
  }
  func.func @transform_1(%arg0: i32, %arg1: i32, %arg2: i32) -> (i32, i32) {
    %c0_i32 = arith.constant 0 : i32
    return %arg2, %arg1 : i32, i32
  }
  func.func @transform_2(%arg0: i32, %arg1: i32, %arg2: i32) -> (i32, i32) {
    %c0_i32 = arith.constant 0 : i32
    %c0_i32_0 = arith.constant 0 : i32
    return %arg0, %c0_i32 : i32, i32
  }
  func.func @transform_3(%arg0: i32, %arg1: i32, %arg2: i32) -> (i32, i32) {
    %c0_i32 = arith.constant 0 : i32
    %c0_i32_0 = arith.constant 0 : i32
    return %c0_i32, %arg1 : i32, i32
  }
  func.func @transform_4(%arg0: i32, %arg1: i32, %arg2: i32) -> (i32, i32) {
    %c0_i32 = arith.constant 0 : i32
    return %arg0, %arg1 : i32, i32
  }
}

</mosaic_0001>

<llo_original>
// kernel: tpu_custom_call.1
$region0: #{tpu_custom_call.1}
  #allocation0 [shape = 'u32[]', space=smem, size = 0x4, offset = 0x4, fixed_abs, tag = 'smem constant byte address 0x4 - core index']
  #allocation1 [shape = 'u32[144,128]{1,0:T(1,128)}', space=vmem, size = 0x12000, scoped, tag = 'internal scratch']
  #allocation2 [shape = 'f32[8,128]{1,0:T(8,128)}', space=vmem, size = 0x1000, scoped, tag = 'scratch operand']
  %s0 = inlined_call_operand.vmem [shape: f32[8,128], index: 0, kind: input, shape index: {}]
  %s1 = inlined_call_operand.hbm [shape: f32[128,128], index: 1, kind: input, shape index: {}]
  %s2 = inlined_call_operand.vmem [shape: f32[8,1], index: 2, kind: input, shape index: {}]
  %s3 = inlined_call_operand.vmem [shape: f32[1,128], index: 3, kind: input, shape index: {}]
  %s4 = inlined_call_operand.hbm [shape: f32[8,128], index: 4, kind: output, shape index: {}]
  %s5 = sld [smem:[#allocation0]]
  $region38: #{tpu_custom_call.1} parent=0
    _
  %s7 = ssub.s32 1, %s5
  %s8 = scalar_select 0, %s7, %s5
  $region1: #{tpu_custom_call.1} parent=0
    #allocation3 [shape = 'u8[65536]{0}', space=vmem, size = 0x10000, scoped, tag = 'input window, operand 1, single buffered']
    #allocation4 [shape = 's32[1]{0}', space=sflag, size = 0x4, scoped, tag = 'scoped memory for tpu_custom_call.1']
    #allocation5 [shape = 's32[1]{0}', space=sflag, size = 0x4, scoped, tag = 'scoped memory for tpu_custom_call.1']
    #allocation6 [shape = 'u8[4096]{0}', space=vmem, size = 0x1000, scoped, tag = 'output window, operand 0, single buffered']
    %9 = vsyncpa [#allocation4], 0
    %10 = vsyncpa [#allocation5], 0
    // Predicated region
    $region2: #{tpu_custom_call.1} parent=1 // pred_check
      _
    $region3: #{tpu_custom_call.1} parent=1 // pred_check_branch
      %12 = sbr.rel (0) target = $region5
    $region4: #{tpu_custom_call.1} parent=1 // pred_region
      _
    $region5: #{tpu_custom_call.1} parent=1 // pred_fallthru
      _
    // Predicated region
    $region6: #{tpu_custom_call.1} parent=1 // pred_check
      _
    $region7: #{tpu_custom_call.1} parent=1 // pred_check_branch
      %14 = sbr.rel (0) target = $region9
    $region8: #{tpu_custom_call.1} parent=1 // pred_region
      %s16 = ssub.s32 2048, 2048
      %17 = vsyncadd [#allocation4], %s16
      %s18 = sshll.u32 [#allocation3], 4
      %s19 = int_to_ptr.vmem [resolvable:$true] %s18
      %24 = dma.hbm_to_vmem [thread:$0]  %s1, 2048, %s19, [#allocation4], 128, 128, 8
    $region9: #{tpu_custom_call.1} parent=1 // pred_fallthru
      _
    // Predicated region
    $region10: #{tpu_custom_call.1} parent=1 // pred_check
      _
    $region11: #{tpu_custom_call.1} parent=1 // pred_check_branch
      %26 = sbr.rel (0) target = $region13
    $region12: #{tpu_custom_call.1} parent=1 // pred_region
      _
    $region13: #{tpu_custom_call.1} parent=1 // pred_fallthru
      _
    // Predicated region
    $region14: #{tpu_custom_call.1} parent=1 // pred_check
      _
    $region15: #{tpu_custom_call.1} parent=1 // pred_check_branch
      %28 = sbr.rel (0) target = $region17
    $region16: #{tpu_custom_call.1} parent=1 // pred_region
      _
    $region17: #{tpu_custom_call.1} parent=1 // pred_fallthru
      _
    // Predicated region
    $region18: #{tpu_custom_call.1} parent=1 // pred_check
      _
    $region19: #{tpu_custom_call.1} parent=1 // pred_check_branch
      %30 = sbr.rel (0) target = $region21
    $region20: #{tpu_custom_call.1} parent=1 // pred_region
      %31 = dma.done [#allocation4], 2048
    $region21: #{tpu_custom_call.1} parent=1 // pred_fallthru
      _
    %p32 = scmp.eq.s32.totalorder 0, 0
    // Predicated region
    $region22: #{tpu_custom_call.1} parent=1 // pred_check
      %p33 = pneg %p32
    $region23: #{tpu_custom_call.1} parent=1 // pred_check_branch
      %35 = sbr.rel (%p33) target = $region25
    $region24: #{tpu_custom_call.1} parent=1 // pred_region
      %36 = vst [vmem:[#allocation2] sm:$0xff] 0.0
    $region25: #{tpu_custom_call.1} parent=1 // pred_fallthru
      _
    %v37 = vld [vmem:[#allocation2] sm:$0xff]
    %v38 = vld [vmem:[%s0] sm:$0xff]
    %v39 = vld [vmem:[#allocation3] sm:$0xff]
    %v40 = vld [vmem:[#allocation3 + $0x8] sm:$0xff]
    %v41 = vld [vmem:[#allocation3 + $0x10] sm:$0xff]
    %v42 = vld [vmem:[#allocation3 + $0x18] sm:$0xff]
    %v43 = vld [vmem:[#allocation3 + $0x20] sm:$0xff]
    %v44 = vld [vmem:[#allocation3 + $0x28] sm:$0xff]
    %v45 = vld [vmem:[#allocation3 + $0x30] sm:$0xff]
    %v46 = vld [vmem:[#allocation3 + $0x38] sm:$0xff]
    %v47 = vld [vmem:[#allocation3 + $0x40] sm:$0xff]
    %v48 = vld [vmem:[#allocation3 + $0x48] sm:$0xff]
    %v49 = vld [vmem:[#allocation3 + $0x50] sm:$0xff]
    %v50 = vld [vmem:[#allocation3 + $0x58] sm:$0xff]
    %v51 = vld [vmem:[#allocation3 + $0x60] sm:$0xff]
    %v52 = vld [vmem:[#allocation3 + $0x68] sm:$0xff]
    %v53 = vld [vmem:[#allocation3 + $0x70] sm:$0xff]
    %v54 = vld [vmem:[#allocation3 + $0x78] sm:$0xff]
    %55 = vmatprep.subr.mxu0 0.0
    %v56 = vand.u32 %v54, 4294901760
    %57 = vmatpush1.msra.mxu0 %v56
    %58 = vmatprep.subr.mxu0 0.0
    %v59 = vand.u32 %v53, 4294901760
    %60 = vmatpush1.msra.mxu0 %v59
    %61 = vmatprep.subr.mxu0 0.0
    %v62 = vand.u32 %v52, 4294901760
    %63 = vmatpush1.msra.mxu0 %v62
    %64 = vmatprep.subr.mxu0 0.0
    %v65 = vand.u32 %v51, 4294901760
    %66 = vmatpush1.msra.mxu0 %v65
    %67 = vmatprep.subr.mxu0 0.0
    %v68 = vand.u32 %v50, 4294901760
    %69 = vmatpush1.msra.mxu0 %v68
    %70 = vmatprep.subr.mxu0 0.0
    %v71 = vand.u32 %v49, 4294901760
    %72 = vmatpush1.msra.mxu0 %v71
    %73 = vmatprep.subr.mxu0 0.0
    %v74 = vand.u32 %v48, 4294901760
    %75 = vmatpush1.msra.mxu0 %v74
    %76 = vmatprep.subr.mxu0 0.0
    %v77 = vand.u32 %v47, 4294901760
    %78 = vmatpush1.msra.mxu0 %v77
    %79 = vmatprep.subr.mxu0 0.0
    %v80 = vand.u32 %v46, 4294901760
    %81 = vmatpush1.msra.mxu0 %v80
    %82 = vmatprep.subr.mxu0 0.0
    %v83 = vand.u32 %v45, 4294901760
    %84 = vmatpush1.msra.mxu0 %v83
    %85 = vmatprep.subr.mxu0 0.0
    %v86 = vand.u32 %v44, 4294901760
    %87 = vmatpush1.msra.mxu0 %v86
    %88 = vmatprep.subr.mxu0 0.0
    %v89 = vand.u32 %v43, 4294901760
    %90 = vmatpush1.msra.mxu0 %v89
    %91 = vmatprep.subr.mxu0 0.0
    %v92 = vand.u32 %v42, 4294901760
    %93 = vmatpush1.msra.mxu0 %v92
    %94 = vmatprep.subr.mxu0 0.0
    %v95 = vand.u32 %v41, 4294901760
    %96 = vmatpush1.msra.mxu0 %v95
    %97 = vmatprep.subr.mxu0 0.0
    %v98 = vand.u32 %v40, 4294901760
    %99 = vmatpush1.msra.mxu0 %v98
    %100 = vmatprep.subr.mxu0 0.0
    %v101 = vand.u32 %v39, 4294901760
    %102 = vmatpush1.msra.mxu0 %v101
    %103 = vmatprep.subr.mxu0 0.0
    %104 = vmatpush2.msra.mxu0 0.0
    %105 = vmatprep.subr.mxu0 0.0
    %106 = vmatpush2.msra.mxu0 0.0
    %107 = vmatprep.subr.mxu0 0.0
    %108 = vmatpush2.msra.mxu0 0.0
    %109 = vmatprep.subr.mxu0 0.0
    %110 = vmatpush2.msra.mxu0 0.0
    %111 = vmatprep.subr.mxu0 0.0
    %112 = vmatpush2.msra.mxu0 0.0
    %113 = vmatprep.subr.mxu0 0.0
    %114 = vmatpush2.msra.mxu0 0.0
    %115 = vmatprep.subr.mxu0 0.0
    %116 = vmatpush2.msra.mxu0 0.0
    %117 = vmatprep.subr.mxu0 0.0
    %118 = vmatpush2.msra.mxu0 0.0
    %119 = vmatprep.subr.mxu0 0.0
    %120 = vmatpush2.msra.mxu0 0.0
    %121 = vmatprep.subr.mxu0 0.0
    %122 = vmatpush2.msra.mxu0 0.0
    %123 = vmatprep.subr.mxu0 0.0
    %124 = vmatpush2.msra.mxu0 0.0
    %125 = vmatprep.subr.mxu0 0.0
    %126 = vmatpush2.msra.mxu0 0.0
    %127 = vmatprep.subr.mxu0 0.0
    %128 = vmatpush2.msra.mxu0 0.0
    %129 = vmatprep.subr.mxu0 0.0
    %130 = vmatpush2.msra.mxu0 0.0
    %131 = vmatprep.subr.mxu0 0.0
    %132 = vmatpush2.msra.mxu0 0.0
    %133 = vmatprep.subr.mxu0 0.0
    %134 = vmatpush2.msra.mxu0 0.0
    %135 = vmatprep.mubr.f32.mxu0 0.0
    %v136 = vand.u32 %v38, 4294901760
    %v137 = vsub.f32 %v38, %v136
    %v138 = vand.u32 %v137, 4294901760
    %v139 = vsub.f32 %v137, %v138
    %v140 = vand.u32 %v139, 4294901760
    %141 = vmatmul.mubr.f32.gmra.mxu0 %v140
    %v142 = vpop.f32.mrf.mxu0
    %v143 = vadd.f32 0.0, %v142
    %v144 = vpop.f32.mrf.mxu0
    %145 = vdwg.mxu0
    %146 = vmatprep.subr.mxu0 0.0
    %v147 = vand.u32 %v54, 4294901760
    %v148 = vsub.f32 %v54, %v147
    %v149 = vand.u32 %v148, 4294901760
    %v150 = vsub.f32 %v148, %v149
    %v151 = vand.u32 %v150, 4294901760
    %152 = vmatpush1.msra.mxu0 %v151
    %153 = vmatprep.subr.mxu0 0.0
    %v154 = vand.u32 %v53, 4294901760
    %v155 = vsub.f32 %v53, %v154
    %v156 = vand.u32 %v155, 4294901760
    %v157 = vsub.f32 %v155, %v156
    %v158 = vand.u32 %v157, 4294901760
    %159 = vmatpush1.msra.mxu0 %v158
    %160 = vmatprep.subr.mxu0 0.0
    %v161 = vand.u32 %v52, 4294901760
    %v162 = vsub.f32 %v52, %v161
    %v163 = vand.u32 %v162, 4294901760
    %v164 = vsub.f32 %v162, %v163
    %v165 = vand.u32 %v164, 4294901760
    %166 = vmatpush1.msra.mxu0 %v165
    %167 = vmatprep.subr.mxu0 0.0
    %v168 = vand.u32 %v51, 4294901760
    %v169 = vsub.f32 %v51, %v168
    %v170 = vand.u32 %v169, 4294901760
    %v171 = vsub.f32 %v169, %v170
    %v172 = vand.u32 %v171, 4294901760
    %173 = vmatpush1.msra.mxu0 %v172
    %174 = vmatprep.subr.mxu0 0.0
    %v175 = vand.u32 %v50, 4294901760
    %v176 = vsub.f32 %v50, %v175
    %v177 = vand.u32 %v176, 4294901760
    %v178 = vsub.f32 %v176, %v177
    %v179 = vand.u32 %v178, 4294901760
    %180 = vmatpush1.msra.mxu0 %v179
    %181 = vmatprep.subr.mxu0 0.0
    %v182 = vand.u32 %v49, 4294901760
    %v183 = vsub.f32 %v49, %v182
    %v184 = vand.u32 %v183, 4294901760
    %v185 = vsub.f32 %v183, %v184
    %v186 = vand.u32 %v185, 4294901760
    %187 = vmatpush1.msra.mxu0 %v186
    %188 = vmatprep.subr.mxu0 0.0
    %v189 = vand.u32 %v48, 4294901760
    %v190 = vsub.f32 %v48, %v189
    %v191 = vand.u32 %v190, 4294901760
    %v192 = vsub.f32 %v190, %v191
    %v193 = vand.u32 %v192, 4294901760
    %194 = vmatpush1.msra.mxu0 %v193
    %195 = vmatprep.subr.mxu0 0.0
    %v196 = vand.u32 %v47, 4294901760
    %v197 = vsub.f32 %v47, %v196
    %v198 = vand.u32 %v197, 4294901760
    %v199 = vsub.f32 %v197, %v198
    %v200 = vand.u32 %v199, 4294901760
    %201 = vmatpush1.msra.mxu0 %v200
    %202 = vmatprep.subr.mxu0 0.0
    %v203 = vand.u32 %v46, 4294901760
    %v204 = vsub.f32 %v46, %v203
    %v205 = vand.u32 %v204, 4294901760
    %v206 = vsub.f32 %v204, %v205
    %v207 = vand.u32 %v206, 4294901760
    %208 = vmatpush1.msra.mxu0 %v207
    %209 = vmatprep.subr.mxu0 0.0
    %v210 = vand.u32 %v45, 4294901760
    %v211 = vsub.f32 %v45, %v210
    %v212 = vand.u32 %v211, 4294901760
    %v213 = vsub.f32 %v211, %v212
    %v214 = vand.u32 %v213, 4294901760
    %215 = vmatpush1.msra.mxu0 %v214
    %216 = vmatprep.subr.mxu0 0.0
    %v217 = vand.u32 %v44, 4294901760
    %v218 = vsub.f32 %v44, %v217
    %v219 = vand.u32 %v218, 4294901760
    %v220 = vsub.f32 %v218, %v219
    %v221 = vand.u32 %v220, 4294901760
    %222 = vmatpush1.msra.mxu0 %v221
    %223 = vmatprep.subr.mxu0 0.0
    %v224 = vand.u32 %v43, 4294901760
    %v225 = vsub.f32 %v43, %v224
    %v226 = vand.u32 %v225, 4294901760
    %v227 = vsub.f32 %v225, %v226
    %v228 = vand.u32 %v227, 4294901760
    %229 = vmatpush1.msra.mxu0 %v228
    %230 = vmatprep.subr.mxu0 0.0
    %v231 = vand.u32 %v42, 4294901760
    %v232 = vsub.f32 %v42, %v231
    %v233 = vand.u32 %v232, 4294901760
    %v234 = vsub.f32 %v232, %v233
    %v235 = vand.u32 %v234, 4294901760
    %236 = vmatpush1.msra.mxu0 %v235
    %237 = vmatprep.subr.mxu0 0.0
    %v238 = vand.u32 %v41, 4294901760
    %v239 = vsub.f32 %v41, %v238
    %v240 = vand.u32 %v239, 4294901760
    %v241 = vsub.f32 %v239, %v240
    %v242 = vand.u32 %v241, 4294901760
    %243 = vmatpush1.msra.mxu0 %v242
    %244 = vmatprep.subr.mxu0 0.0
    %v245 = vand.u32 %v40, 4294901760
    %v246 = vsub.f32 %v40, %v245
    %v247 = vand.u32 %v246, 4294901760
    %v248 = vsub.f32 %v246, %v247
    %v249 = vand.u32 %v248, 4294901760
    %250 = vmatpush1.msra.mxu0 %v249
    %251 = vmatprep.subr.mxu0 0.0
    %v252 = vand.u32 %v39, 4294901760
    %v253 = vsub.f32 %v39, %v252
    %v254 = vand.u32 %v253, 4294901760
    %v255 = vsub.f32 %v253, %v254
    %v256 = vand.u32 %v255, 4294901760
    %257 = vmatpush1.msra.mxu0 %v256
    %258 = vmatprep.subr.mxu0 0.0
    %259 = vmatpush2.msra.mxu0 0.0
    %260 = vmatprep.subr.mxu0 0.0
    %261 = vmatpush2.msra.mxu0 0.0
    %262 = vmatprep.subr.mxu0 0.0
    %263 = vmatpush2.msra.mxu0 0.0
    %264 = vmatprep.subr.mxu0 0.0
    %265 = vmatpush2.msra.mxu0 0.0
    %266 = vmatprep.subr.mxu0 0.0
    %267 = vmatpush2.msra.mxu0 0.0
    %268 = vmatprep.subr.mxu0 0.0
    %269 = vmatpush2.msra.mxu0 0.0
    %270 = vmatprep.subr.mxu0 0.0
    %271 = vmatpush2.msra.mxu0 0.0
    %272 = vmatprep.subr.mxu0 0.0
    %273 = vmatpush2.msra.mxu0 0.0
    %274 = vmatprep.subr.mxu0 0.0
    %275 = vmatpush2.msra.mxu0 0.0
    %276 = vmatprep.subr.mxu0 0.0
    %277 = vmatpush2.msra.mxu0 0.0
    %278 = vmatprep.subr.mxu0 0.0
    %279 = vmatpush2.msra.mxu0 0.0
    %280 = vmatprep.subr.mxu0 0.0
    %281 = vmatpush2.msra.mxu0 0.0
    %282 = vmatprep.subr.mxu0 0.0
    %283 = vmatpush2.msra.mxu0 0.0
    %284 = vmatprep.subr.mxu0 0.0
    %285 = vmatpush2.msra.mxu0 0.0
    %286 = vmatprep.subr.mxu0 0.0
    %287 = vmatpush2.msra.mxu0 0.0
    %288 = vmatprep.subr.mxu0 0.0
    %289 = vmatpush2.msra.mxu0 0.0
    %290 = vmatprep.mubr.f32.mxu0 0.0
    %v291 = vand.u32 %v38, 4294901760
    %292 = vmatmul.mubr.f32.gmra.mxu0 %v291
    %v293 = vpop.f32.mrf.mxu0
    %v294 = vadd.f32 %v143, %v293
    %v295 = vpop.f32.mrf.mxu0
    %296 = vdwg.mxu0
    %297 = vmatprep.subr.mxu0 0.0
    %v298 = vand.u32 %v54, 4294901760
    %v299 = vsub.f32 %v54, %v298
    %300 = vmatpush1.msra.mxu0 %v299
    %301 = vmatprep.subr.mxu0 0.0
    %v302 = vand.u32 %v53, 4294901760
    %v303 = vsub.f32 %v53, %v302
    %304 = vmatpush1.msra.mxu0 %v303
    %305 = vmatprep.subr.mxu0 0.0
    %v306 = vand.u32 %v52, 4294901760
    %v307 = vsub.f32 %v52, %v306
    %308 = vmatpush1.msra.mxu0 %v307
    %309 = vmatprep.subr.mxu0 0.0
    %v310 = vand.u32 %v51, 4294901760
    %v311 = vsub.f32 %v51, %v310
    %312 = vmatpush1.msra.mxu0 %v311
    %313 = vmatprep.subr.mxu0 0.0
    %v314 = vand.u32 %v50, 4294901760
    %v315 = vsub.f32 %v50, %v314
    %316 = vmatpush1.msra.mxu0 %v315
    %317 = vmatprep.subr.mxu0 0.0
    %v318 = vand.u32 %v49, 4294901760
    %v319 = vsub.f32 %v49, %v318
    %320 = vmatpush1.msra.mxu0 %v319
    %321 = vmatprep.subr.mxu0 0.0
    %v322 = vand.u32 %v48, 4294901760
    %v323 = vsub.f32 %v48, %v322
    %324 = vmatpush1.msra.mxu0 %v323
    %325 = vmatprep.subr.mxu0 0.0
    %v326 = vand.u32 %v47, 4294901760
    %v327 = vsub.f32 %v47, %v326
    %328 = vmatpush1.msra.mxu0 %v327
    %329 = vmatprep.subr.mxu0 0.0
    %v330 = vand.u32 %v46, 4294901760
    %v331 = vsub.f32 %v46, %v330
    %332 = vmatpush1.msra.mxu0 %v331
    %333 = vmatprep.subr.mxu0 0.0
    %v334 = vand.u32 %v45, 4294901760
    %v335 = vsub.f32 %v45, %v334
    %336 = vmatpush1.msra.mxu0 %v335
    %337 = vmatprep.subr.mxu0 0.0
    %v338 = vand.u32 %v44, 4294901760
    %v339 = vsub.f32 %v44, %v338
    %340 = vmatpush1.msra.mxu0 %v339
    %341 = vmatprep.subr.mxu0 0.0
    %v342 = vand.u32 %v43, 4294901760
    %v343 = vsub.f32 %v43, %v342
    %344 = vmatpush1.msra.mxu0 %v343
    %345 = vmatprep.subr.mxu0 0.0
    %v346 = vand.u32 %v42, 4294901760
    %v347 = vsub.f32 %v42, %v346
    %348 = vmatpush1.msra.mxu0 %v347
    %349 = vmatprep.subr.mxu0 0.0
    %v350 = vand.u32 %v41, 4294901760
    %v351 = vsub.f32 %v41, %v350
    %352 = vmatpush1.msra.mxu0 %v351
    %353 = vmatprep.subr.mxu0 0.0
    %v354 = vand.u32 %v40, 4294901760
    %v355 = vsub.f32 %v40, %v354
    %356 = vmatpush1.msra.mxu0 %v355
    %357 = vmatprep.subr.mxu0 0.0
    %v358 = vand.u32 %v39, 4294901760
    %v359 = vsub.f32 %v39, %v358
    %360 = vmatpush1.msra.mxu0 %v359
    %361 = vmatprep.subr.mxu0 0.0
    %362 = vmatpush2.msra.mxu0 0.0
    %363 = vmatprep.subr.mxu0 0.0
    %364 = vmatpush2.msra.mxu0 0.0
    %365 = vmatprep.subr.mxu0 0.0
    %366 = vmatpush2.msra.mxu0 0.0
    %367 = vmatprep.subr.mxu0 0.0
    %368 = vmatpush2.msra.mxu0 0.0
    %369 = vmatprep.subr.mxu0 0.0
    %370 = vmatpush2.msra.mxu0 0.0
    %371 = vmatprep.subr.mxu0 0.0
    %372 = vmatpush2.msra.mxu0 0.0
    %373 = vmatprep.subr.mxu0 0.0
    %374 = vmatpush2.msra.mxu0 0.0
    %375 = vmatprep.subr.mxu0 0.0
    %376 = vmatpush2.msra.mxu0 0.0
    %377 = vmatprep.subr.mxu0 0.0
    %378 = vmatpush2.msra.mxu0 0.0
    %379 = vmatprep.subr.mxu0 0.0
    %380 = vmatpush2.msra.mxu0 0.0
    %381 = vmatprep.subr.mxu0 0.0
    %382 = vmatpush2.msra.mxu0 0.0
    %383 = vmatprep.subr.mxu0 0.0
    %384 = vmatpush2.msra.mxu0 0.0
    %385 = vmatprep.subr.mxu0 0.0
    %386 = vmatpush2.msra.mxu0 0.0
    %387 = vmatprep.subr.mxu0 0.0
    %388 = vmatpush2.msra.mxu0 0.0
    %389 = vmatprep.subr.mxu0 0.0
    %390 = vmatpush2.msra.mxu0 0.0
    %391 = vmatprep.subr.mxu0 0.0
    %392 = vmatpush2.msra.mxu0 0.0
    %393 = vmatprep.mubr.f32.mxu0 0.0
    %v394 = vand.u32 %v38, 4294901760
    %v395 = vsub.f32 %v38, %v394
    %396 = vmatmul.mubr.f32.gmra.mxu0 %v395
    %v397 = vpop.f32.mrf.mxu0
    %v398 = vadd.f32 %v294, %v397
    %v399 = vpop.f32.mrf.mxu0
    %400 = vdwg.mxu0
    %401 = vmatprep.subr.mxu0 0.0
    %v402 = vand.u32 %v54, 4294901760
    %403 = vmatpush1.msra.mxu0 %v402
    %404 = vmatprep.subr.mxu0 0.0
    %v405 = vand.u32 %v53, 4294901760
    %406 = vmatpush1.msra.mxu0 %v405
    %407 = vmatprep.subr.mxu0 0.0
    %v408 = vand.u32 %v52, 4294901760
    %409 = vmatpush1.msra.mxu0 %v408
    %410 = vmatprep.subr.mxu0 0.0
    %v411 = vand.u32 %v51, 4294901760
    %412 = vmatpush1.msra.mxu0 %v411
    %413 = vmatprep.subr.mxu0 0.0
    %v414 = vand.u32 %v50, 4294901760
    %415 = vmatpush1.msra.mxu0 %v414
    %416 = vmatprep.subr.mxu0 0.0
    %v417 = vand.u32 %v49, 4294901760
    %418 = vmatpush1.msra.mxu0 %v417
    %419 = vmatprep.subr.mxu0 0.0
    %v420 = vand.u32 %v48, 4294901760
    %421 = vmatpush1.msra.mxu0 %v420
    %422 = vmatprep.subr.mxu0 0.0
    %v423 = vand.u32 %v47, 4294901760
    %424 = vmatpush1.msra.mxu0 %v423
    %425 = vmatprep.subr.mxu0 0.0
    %v426 = vand.u32 %v46, 4294901760
    %427 = vmatpush1.msra.mxu0 %v426
    %428 = vmatprep.subr.mxu0 0.0
    %v429 = vand.u32 %v45, 4294901760
    %430 = vmatpush1.msra.mxu0 %v429
    %431 = vmatprep.subr.mxu0 0.0
    %v432 = vand.u32 %v44, 4294901760
    %433 = vmatpush1.msra.mxu0 %v432
    %434 = vmatprep.subr.mxu0 0.0
    %v435 = vand.u32 %v43, 4294901760
    %436 = vmatpush1.msra.mxu0 %v435
    %437 = vmatprep.subr.mxu0 0.0
    %v438 = vand.u32 %v42, 4294901760
    %439 = vmatpush1.msra.mxu0 %v438
    %440 = vmatprep.subr.mxu0 0.0
    %v441 = vand.u32 %v41, 4294901760
    %442 = vmatpush1.msra.mxu0 %v441
    %443 = vmatprep.subr.mxu0 0.0
    %v444 = vand.u32 %v40, 4294901760
    %445 = vmatpush1.msra.mxu0 %v444
    %446 = vmatprep.subr.mxu0 0.0
    %v447 = vand.u32 %v39, 4294901760
    %448 = vmatpush1.msra.mxu0 %v447
    %449 = vmatprep.subr.mxu0 0.0
    %450 = vmatpush2.msra.mxu0 0.0
    %451 = vmatprep.subr.mxu0 0.0
    %452 = vmatpush2.msra.mxu0 0.0
    %453 = vmatprep.subr.mxu0 0.0
    %454 = vmatpush2.msra.mxu0 0.0
    %455 = vmatprep.subr.mxu0 0.0
    %456 = vmatpush2.msra.mxu0 0.0
    %457 = vmatprep.subr.mxu0 0.0
    %458 = vmatpush2.msra.mxu0 0.0
    %459 = vmatprep.subr.mxu0 0.0
    %460 = vmatpush2.msra.mxu0 0.0
    %461 = vmatprep.subr.mxu0 0.0
    %462 = vmatpush2.msra.mxu0 0.0
    %463 = vmatprep.subr.mxu0 0.0
    %464 = vmatpush2.msra.mxu0 0.0
    %465 = vmatprep.subr.mxu0 0.0
    %466 = vmatpush2.msra.mxu0 0.0
    %467 = vmatprep.subr.mxu0 0.0
    %468 = vmatpush2.msra.mxu0 0.0
    %469 = vmatprep.subr.mxu0 0.0
    %470 = vmatpush2.msra.mxu0 0.0
    %471 = vmatprep.subr.mxu0 0.0
    %472 = vmatpush2.msra.mxu0 0.0
    %473 = vmatprep.subr.mxu0 0.0
    %474 = vmatpush2.msra.mxu0 0.0
    %475 = vmatprep.subr.mxu0 0.0
    %476 = vmatpush2.msra.mxu0 0.0
    %477 = vmatprep.subr.mxu0 0.0
    %478 = vmatpush2.msra.mxu0 0.0
    %479 = vmatprep.subr.mxu0 0.0
    %480 = vmatpush2.msra.mxu0 0.0
    %481 = vmatprep.mubr.f32.mxu0 0.0
    %v482 = vand.u32 %v38, 4294901760
    %v483 = vsub.f32 %v38, %v482
    %v484 = vand.u32 %v483, 4294901760
    %485 = vmatmul.mubr.f32.gmra.mxu0 %v484
    %v486 = vpop.f32.mrf.mxu0
    %v487 = vadd.f32 %v398, %v486
    %v488 = vpop.f32.mrf.mxu0
    %489 = vdwg.mxu0
    %490 = vmatprep.subr.mxu0 0.0
    %v491 = vand.u32 %v54, 4294901760
    %v492 = vsub.f32 %v54, %v491
    %v493 = vand.u32 %v492, 4294901760
    %494 = vmatpush1.msra.mxu0 %v493
    %495 = vmatprep.subr.mxu0 0.0
    %v496 = vand.u32 %v53, 4294901760
    %v497 = vsub.f32 %v53, %v496
    %v498 = vand.u32 %v497, 4294901760
    %499 = vmatpush1.msra.mxu0 %v498
    %500 = vmatprep.subr.mxu0 0.0
    %v501 = vand.u32 %v52, 4294901760
    %v502 = vsub.f32 %v52, %v501
    %v503 = vand.u32 %v502, 4294901760
    %504 = vmatpush1.msra.mxu0 %v503
    %505 = vmatprep.subr.mxu0 0.0
    %v506 = vand.u32 %v51, 4294901760
    %v507 = vsub.f32 %v51, %v506
    %v508 = vand.u32 %v507, 4294901760
    %509 = vmatpush1.msra.mxu0 %v508
    %510 = vmatprep.subr.mxu0 0.0
    %v511 = vand.u32 %v50, 4294901760
    %v512 = vsub.f32 %v50, %v511
    %v513 = vand.u32 %v512, 4294901760
    %514 = vmatpush1.msra.mxu0 %v513
    %515 = vmatprep.subr.mxu0 0.0
    %v516 = vand.u32 %v49, 4294901760
    %v517 = vsub.f32 %v49, %v516
    %v518 = vand.u32 %v517, 4294901760
    %519 = vmatpush1.msra.mxu0 %v518
    %520 = vmatprep.subr.mxu0 0.0
    %v521 = vand.u32 %v48, 4294901760
    %v522 = vsub.f32 %v48, %v521
    %v523 = vand.u32 %v522, 4294901760
    %524 = vmatpush1.msra.mxu0 %v523
    %525 = vmatprep.subr.mxu0 0.0
    %v526 = vand.u32 %v47, 4294901760
    %v527 = vsub.f32 %v47, %v526
    %v528 = vand.u32 %v527, 4294901760
    %529 = vmatpush1.msra.mxu0 %v528
    %530 = vmatprep.subr.mxu0 0.0
    %v531 = vand.u32 %v46, 4294901760
    %v532 = vsub.f32 %v46, %v531
    %v533 = vand.u32 %v532, 4294901760
    %534 = vmatpush1.msra.mxu0 %v533
    %535 = vmatprep.subr.mxu0 0.0
    %v536 = vand.u32 %v45, 4294901760
    %v537 = vsub.f32 %v45, %v536
    %v538 = vand.u32 %v537, 4294901760
    %539 = vmatpush1.msra.mxu0 %v538
    %540 = vmatprep.subr.mxu0 0.0
    %v541 = vand.u32 %v44, 4294901760
    %v542 = vsub.f32 %v44, %v541
    %v543 = vand.u32 %v542, 4294901760
    %544 = vmatpush1.msra.mxu0 %v543
    %545 = vmatprep.subr.mxu0 0.0
    %v546 = vand.u32 %v43, 4294901760
    %v547 = vsub.f32 %v43, %v546
    %v548 = vand.u32 %v547, 4294901760
    %549 = vmatpush1.msra.mxu0 %v548
    %550 = vmatprep.subr.mxu0 0.0
    %v551 = vand.u32 %v42, 4294901760
    %v552 = vsub.f32 %v42, %v551
    %v553 = vand.u32 %v552, 4294901760
    %554 = vmatpush1.msra.mxu0 %v553
    %555 = vmatprep.subr.mxu0 0.0
    %v556 = vand.u32 %v41, 4294901760
    %v557 = vsub.f32 %v41, %v556
    %v558 = vand.u32 %v557, 4294901760
    %559 = vmatpush1.msra.mxu0 %v558
    %560 = vmatprep.subr.mxu0 0.0
    %v561 = vand.u32 %v40, 4294901760
    %v562 = vsub.f32 %v40, %v561
    %v563 = vand.u32 %v562, 4294901760
    %564 = vmatpush1.msra.mxu0 %v563
    %565 = vmatprep.subr.mxu0 0.0
    %v566 = vand.u32 %v39, 4294901760
    %v567 = vsub.f32 %v39, %v566
    %v568 = vand.u32 %v567, 4294901760
    %569 = vmatpush1.msra.mxu0 %v568
    %570 = vmatprep.subr.mxu0 0.0
    %571 = vmatpush2.msra.mxu0 0.0
    %572 = vmatprep.subr.mxu0 0.0
    %573 = vmatpush2.msra.mxu0 0.0
    %574 = vmatprep.subr.mxu0 0.0
    %575 = vmatpush2.msra.mxu0 0.0
    %576 = vmatprep.subr.mxu0 0.0
    %577 = vmatpush2.msra.mxu0 0.0
    %578 = vmatprep.subr.mxu0 0.0
    %579 = vmatpush2.msra.mxu0 0.0
    %580 = vmatprep.subr.mxu0 0.0
    %581 = vmatpush2.msra.mxu0 0.0
    %582 = vmatprep.subr.mxu0 0.0
    %583 = vmatpush2.msra.mxu0 0.0
    %584 = vmatprep.subr.mxu0 0.0
    %585 = vmatpush2.msra.mxu0 0.0
    %586 = vmatprep.subr.mxu0 0.0
    %587 = vmatpush2.msra.mxu0 0.0
    %588 = vmatprep.subr.mxu0 0.0
    %589 = vmatpush2.msra.mxu0 0.0
    %590 = vmatprep.subr.mxu0 0.0
    %591 = vmatpush2.msra.mxu0 0.0
    %592 = vmatprep.subr.mxu0 0.0
    %593 = vmatpush2.msra.mxu0 0.0
    %594 = vmatprep.subr.mxu0 0.0
    %595 = vmatpush2.msra.mxu0 0.0
    %596 = vmatprep.subr.mxu0 0.0
    %597 = vmatpush2.msra.mxu0 0.0
    %598 = vmatprep.subr.mxu0 0.0
    %599 = vmatpush2.msra.mxu0 0.0
    %600 = vmatprep.subr.mxu0 0.0
    %601 = vmatpush2.msra.mxu0 0.0
    %602 = vmatprep.mubr.f32.mxu0 0.0
    %v603 = vand.u32 %v38, 4294901760
    %604 = vmatmul.mubr.f32.gmra.mxu0 %v603
    %v605 = vpop.f32.mrf.mxu0
    %v606 = vadd.f32 %v487, %v605
    %v607 = vpop.f32.mrf.mxu0
    %608 = vdwg.mxu0
    %609 = vmatprep.subr.mxu0 0.0
    %v610 = vand.u32 %v54, 4294901760
    %611 = vmatpush1.msra.mxu0 %v610
    %612 = vmatprep.subr.mxu0 0.0
    %v613 = vand.u32 %v53, 4294901760
    %614 = vmatpush1.msra.mxu0 %v613
    %615 = vmatprep.subr.mxu0 0.0
    %v616 = vand.u32 %v52, 4294901760
    %617 = vmatpush1.msra.mxu0 %v616
    %618 = vmatprep.subr.mxu0 0.0
    %v619 = vand.u32 %v51, 4294901760
    %620 = vmatpush1.msra.mxu0 %v619
    %621 = vmatprep.subr.mxu0 0.0
    %v622 = vand.u32 %v50, 4294901760
    %623 = vmatpush1.msra.mxu0 %v622
    %624 = vmatprep.subr.mxu0 0.0
    %v625 = vand.u32 %v49, 4294901760
    %626 = vmatpush1.msra.mxu0 %v625
    %627 = vmatprep.subr.mxu0 0.0
    %v628 = vand.u32 %v48, 4294901760
    %629 = vmatpush1.msra.mxu0 %v628
    %630 = vmatprep.subr.mxu0 0.0
    %v631 = vand.u32 %v47, 4294901760
    %632 = vmatpush1.msra.mxu0 %v631
    %633 = vmatprep.subr.mxu0 0.0
    %v634 = vand.u32 %v46, 4294901760
    %635 = vmatpush1.msra.mxu0 %v634
    %636 = vmatprep.subr.mxu0 0.0
    %v637 = vand.u32 %v45, 4294901760
    %638 = vmatpush1.msra.mxu0 %v637
    %639 = vmatprep.subr.mxu0 0.0
    %v640 = vand.u32 %v44, 4294901760
    %641 = vmatpush1.msra.mxu0 %v640
    %642 = vmatprep.subr.mxu0 0.0
    %v643 = vand.u32 %v43, 4294901760
    %644 = vmatpush1.msra.mxu0 %v643
    %645 = vmatprep.subr.mxu0 0.0
    %v646 = vand.u32 %v42, 4294901760
    %647 = vmatpush1.msra.mxu0 %v646
    %648 = vmatprep.subr.mxu0 0.0
    %v649 = vand.u32 %v41, 4294901760
    %650 = vmatpush1.msra.mxu0 %v649
    %651 = vmatprep.subr.mxu0 0.0
    %v652 = vand.u32 %v40, 4294901760
    %653 = vmatpush1.msra.mxu0 %v652
    %654 = vmatprep.subr.mxu0 0.0
    %v655 = vand.u32 %v39, 4294901760
    %656 = vmatpush1.msra.mxu0 %v655
    %657 = vmatprep.subr.mxu0 0.0
    %658 = vmatpush2.msra.mxu0 0.0
    %659 = vmatprep.subr.mxu0 0.0
    %660 = vmatpush2.msra.mxu0 0.0
    %661 = vmatprep.subr.mxu0 0.0
    %662 = vmatpush2.msra.mxu0 0.0
    %663 = vmatprep.subr.mxu0 0.0
    %664 = vmatpush2.msra.mxu0 0.0
    %665 = vmatprep.subr.mxu0 0.0
    %666 = vmatpush2.msra.mxu0 0.0
    %667 = vmatprep.subr.mxu0 0.0
    %668 = vmatpush2.msra.mxu0 0.0
    %669 = vmatprep.subr.mxu0 0.0
    %670 = vmatpush2.msra.mxu0 0.0
    %671 = vmatprep.subr.mxu0 0.0
    %672 = vmatpush2.msra.mxu0 0.0
    %673 = vmatprep.subr.mxu0 0.0
    %674 = vmatpush2.msra.mxu0 0.0
    %675 = vmatprep.subr.mxu0 0.0
    %676 = vmatpush2.msra.mxu0 0.0
    %677 = vmatprep.subr.mxu0 0.0
    %678 = vmatpush2.msra.mxu0 0.0
    %679 = vmatprep.subr.mxu0 0.0
    %680 = vmatpush2.msra.mxu0 0.0
    %681 = vmatprep.subr.mxu0 0.0
    %682 = vmatpush2.msra.mxu0 0.0
    %683 = vmatprep.subr.mxu0 0.0
    %684 = vmatpush2.msra.mxu0 0.0
    %685 = vmatprep.subr.mxu0 0.0
    %686 = vmatpush2.msra.mxu0 0.0
    %687 = vmatprep.subr.mxu0 0.0
    %688 = vmatpush2.msra.mxu0 0.0
    %689 = vmatprep.mubr.f32.mxu0 0.0
    %v690 = vand.u32 %v38, 4294901760
    %691 = vmatmul.mubr.f32.gmra.mxu0 %v690
    %v692 = vpop.f32.mrf.mxu0
    %v693 = vadd.f32 %v606, %v692
    %v694 = vpop.f32.mrf.mxu0
    %695 = vdwg.mxu0
    %v696 = vadd.f32 %v37, %v693
    %697 = vst [vmem:[#allocation2] sm:$0xff] %v696
    // Predicated region
    $region26: #{tpu_custom_call.1} parent=1 // pred_check
      %p698 = pneg %p32
    $region27: #{tpu_custom_call.1} parent=1 // pred_check_branch
      %700 = sbr.rel (%p698) target = $region29
    $region28: #{tpu_custom_call.1} parent=1 // pred_region
      %v701 = vld [vmem:[#allocation2] sm:$0xff]
      %v702 = vld [vmem:[%s2] sm:$0xff]
      %704 = vset.pattern.permute.xlu0 0
      %705 = vperm.xlu0 %704, %v702
      %v706 = vpop.permute.xlu0 %705
      %v708 = vmul.f32 %v701, %v706
      %v709 = vld [vmem:[%s3] sm:$0x1]
      %v711 = vlaneseq
      %v712 = vshrl.u32 %v711, 7
      %v713 = vsub.s32 0, %v712
      %v714 = vrot.slane %v709, %v713
      %v716 = vmul.f32 %v708, %v714
      %717 = vst [vmem:[#allocation6] sm:$0xff] %v716
    $region29: #{tpu_custom_call.1} parent=1 // pred_fallthru
      _
    // Predicated region
    $region30: #{tpu_custom_call.1} parent=1 // pred_check
      _
    $region31: #{tpu_custom_call.1} parent=1 // pred_check_branch
      %719 = sbr.rel (0) target = $region33
    $region32: #{tpu_custom_call.1} parent=1 // pred_region
      %s721 = ssub.s32 128, 128
      %722 = vsyncadd [#allocation5], %s721
      %s724 = sshll.u32 [#allocation6], 4
      %s725 = int_to_ptr.vmem [resolvable:$true] %s724
      %727 = dma.vmem_to_hbm [thread:$0]  %s725, 128, %s4, [#allocation5]
    $region33: #{tpu_custom_call.1} parent=1 // pred_fallthru
      _
    // Predicated region
    $region34: #{tpu_custom_call.1} parent=1 // pred_check
      _
    $region35: #{tpu_custom_call.1} parent=1 // pred_check_branch
      %729 = sbr.rel (0) target = $region37
    $region36: #{tpu_custom_call.1} parent=1 // pred_region
      %730 = dma.done [#allocation5], 128
    $region37: #{tpu_custom_call.1} parent=1 // pred_fallthru
      _
    %731 = vsyncpa [#allocation4], 1
    %732 = vsyncpa [#allocation5], 1

</llo_original>
